<compile_context>
chip_gen: v6e
topology: v6e:2x2x1
jax: 0.10.0
libtpu: 0.0.40
codegen_flags: <defaults>
</compile_context>

<pallas_src>
import functools

import jax
import jax.numpy as jnp
from jax import lax
from jax.experimental import pallas as pl
from jax.experimental.pallas import tpu as pltpu

K = 3      # conv kernel width ("same" padding = 1)
HALO = 2   # halo of the fused two-conv receptive field (5)


def _shift_cols(x, k):
    """result[:, p] = x[:, p + k]; the last k columns are wraparound don't-cares here.

    Written as two static lane slices + concat (unambiguous semantics); the stacked im2col
    copy below dominates either way.  # TODO(synk): pltpu.roll would put this on the XLU slot.
    """
    if k == 0:
        return x
    return jnp.concatenate([x[:, k:], x[:, :k]], axis=1)


def _prepost_deepclean_kernel(bt, tt, t_total,
                              x_ref, halo_ref, w1_ref, b1_ref, w2_ref, b2_ref,
                              out_ref):
    L = tt + 2 * HALO
    j = pl.program_id(1)

    # h column p corresponds to global time j*tt - 1 + p; zero it outside [0, T).
    # That is exactly conv2's zero padding, and it makes time-tile boundaries exact.
    col = lax.broadcasted_iota(jnp.int32, (1, L), 1)
    g_h = col + j * tt - 1
    keep = jnp.logical_and(g_h >= 0, g_h < t_total)

    w1 = w1_ref[...]       # (H, 3W)  -- 1/input_scale folded in, tap-major columns
    b1 = b1_ref[...]       # (H, 1)   -- input_shift folded in
    w2 = w2_ref[...]       # (3, H)   -- output_scale folded in
    b2 = b2_ref[0]         # scalar   -- output_scale * b2 + output_shift

    rows = []
    for b in range(bt):    # static, small (<= 8 typically)
        hl = halo_ref[b, 0, :, 0:HALO]              # (W, 2)  x at global cols j*tt-2 .. j*tt-1
        hr = halo_ref[b, 0, :, HALO:2 * HALO]       # (W, 2)  x at global cols (j+1)*tt .. +1
        xm = x_ref[b]                               # (W, tt) bf16 stream
        xfull = jnp.concatenate([hl, xm, hr], axis=1).astype(jnp.float32)   # (W, L)

        # --- conv1 (W -> H): input-side im2col, one shared-weight MXU matmul, no tap combine
        xs = jnp.concatenate(
            [xfull, _shift_cols(xfull, 1), _shift_cols(xfull, 2)], axis=0)  # (3W, L)
        h = jnp.tanh(jnp.dot(w1, xs, preferred_element_type=jnp.float32) + b1)  # (H, L)
        h = jnp.where(keep, h, 0.0)

        # --- conv2 (H -> 1): one matmul, then a 3-row shifted add (single output channel)
        p2 = jnp.dot(w2, h, preferred_element_type=jnp.float32)            # (3, L)
        rows.append(p2[0:1, 0:tt] + p2[1:2, 1:tt + 1] + p2[2:3, 2:tt + 2])  # (1, tt)

    out = rows[0] if bt == 1 else jnp.concatenate(rows, axis=0)            # (bt, tt)
    out_ref[...] = (out + b2).astype(out_ref.dtype)


def prepost_deepclean(x, input_shift, input_scale, w1, b1, w2, b2,
                      output_scale, output_shift,
                      block_b=None, block_t=None, stream_dtype=jnp.bfloat16):
    B, W, T = x.shape
    Kw, H, Win = w1.shape
    assert Kw == K and Win == W
    f32 = jnp.float32

    # --- block sizes --------------------------------------------------------
    if block_b is None:
        # whole batch per step when small (block dim == full dim), else sublane-dense 8 rows
        block_b = B if B <= 8 else (8 if B % 8 == 0 else B)
    assert B % block_b == 0 and (block_b == B or block_b % 8 == 0)
    if block_t is None:
        block_t = T
        if T > 1024:
            for cand in range(1024, 127, -128):
                if T % cand == 0:
                    block_t = cand
                    break
    assert T % block_t == 0
    bt, tt = block_b, block_t
    gb, gt = B // bt, T // tt

    # --- fold pre/post processing into the conv parameters (exact linear rewrites) ---
    inv = (1.0 / input_scale.astype(f32)).reshape(W)                        # (W,)
    shift = input_shift.astype(f32).reshape(W)                              # (W,)
    w1f = w1.astype(f32) * inv[None, None, :]                               # (K, H, W)
    w1_mat = jnp.concatenate([w1f[k] for k in range(K)], axis=1)            # (H, 3W), tap-major
    b1_col = (b1.astype(f32).reshape(H, 1)
              - jnp.einsum("khw,w->h", w1f, shift).reshape(H, 1))           # (H, 1)
    w2_mat = (output_scale * w2[:, 0, :]).astype(f32)                       # (3, H)
    b2_eff = (output_scale * b2.reshape(-1)[0] + output_shift).astype(f32).reshape(1)

    # --- x stays in its native (B, W, T) layout, streamed in bf16; a small side array
    #     carries each time-tile's 2-column halo.  Out-of-range halo columns hold
    #     input_shift so the folded normalization sees exact zero padding there.
    x_s = x.astype(stream_dtype)
    pad = jnp.broadcast_to(input_shift.astype(stream_dtype).reshape(1, W, 1), (B, W, HALO))
    x_pad = jnp.concatenate([pad, x_s, pad], axis=-1)                       # (B, W, T + 4)
    # TODO(synk): for very large T // tt this per-tile halo gather should become a strided
    # reshape or an in-kernel overlap DMA instead of a python loop of slices.
    halos = jnp.stack(
        [jnp.concatenate([x_pad[:, :, j * tt: j * tt + HALO],
                          x_pad[:, :, j * tt + tt + HALO: j * tt + tt + 2 * HALO]],
                         axis=-1)
         for j in range(gt)], axis=1)                                       # (B, gt, W, 4)

    kernel = functools.partial(_prepost_deepclean_kernel, bt, tt, T)
    cost = pl.CostEstimate(
        flops=int(2 * B * T * (K * W * H + K * H)),
        transcendentals=int(B * T * H),
        bytes_accessed=int(x_s.size * x_s.dtype.itemsize + B * T * 4
                           + halos.size * halos.dtype.itemsize))

    out = pl.pallas_call(
        kernel,
        out_shape=jax.ShapeDtypeStruct((B, T), f32),
        grid=(gb, gt),
        in_specs=[
            pl.BlockSpec((bt, W, tt), lambda i, j: (i, 0, j)),             # x (bf16, native layout)
            pl.BlockSpec((bt, 1, W, 2 * HALO), lambda i, j: (i, j, 0, 0)),  # per-tile halo columns
            pl.BlockSpec((H, K * W), lambda i, j: (0, 0)),                 # conv1 weight (shared, folded)
            pl.BlockSpec((H, 1), lambda i, j: (0, 0)),                     # conv1 bias (folded)
            pl.BlockSpec((K, H), lambda i, j: (0, 0)),                     # conv2 weight (folded)
            pl.BlockSpec(memory_space=pltpu.MemorySpace.SMEM),             # scalar output bias
        ],
        out_specs=pl.BlockSpec((bt, tt), lambda i, j: (i, j)),
        compiler_params=pltpu.CompilerParams(
            dimension_semantics=("parallel", "parallel")),
        cost_estimate=cost,
    )(x_s, halos, w1_mat, b1_col, w2_mat, b2_eff)
    return out


def reference(x, input_shift, input_scale, w1, b1, w2, b2, output_scale, output_shift):
    """Pure-JAX reference matching the PyTorch forward semantics."""
    xn = (x - input_shift) / input_scale
    w1_oik = jnp.transpose(w1, (1, 2, 0))                        # (out, in, k), torch Conv1d layout
    h = lax.conv_general_dilated(xn, w1_oik, (1,), [(1, 1)],
                                 dimension_numbers=("NCH", "OIH", "NCH"))
    h = jnp.tanh(h + b1.reshape(1, -1, 1))
    w2_oik = jnp.transpose(w2, (1, 2, 0))
    o = lax.conv_general_dilated(h, w2_oik, (1,), [(1, 1)],
                                 dimension_numbers=("NCH", "OIH", "NCH"))
    o = (o + b2.reshape(1, 1, 1))[:, 0, :]
    return output_scale * o + output_shift


if __name__ == "__main__":
    B, W, T, H = 2, 8, 256, 16                                   # batch, num_witnesses, time, hidden
    key = jax.random.PRNGKey(0)
    ks = jax.random.split(key, 7)

    x = jax.random.normal(ks[0], (B, W, T), jnp.float32)

    # pre/post processing params (shapes exactly as in PrePostDeepClean.__init__/fit):
    # input_shift/scale: (num_witnesses, 1); output_shift/scale: scalar
    input_shift = 0.1 * jax.random.normal(ks[1], (W, 1), jnp.float32)
    input_scale = 1.0 + 0.1 * jax.random.uniform(ks[2], (W, 1), jnp.float32)
    output_shift = jnp.float32(0.25)
    output_scale = jnp.float32(1.5)

    # TODO(synk): the real DeepClean architecture is checkpoint-defined; a representative
    # Conv1d(W->H,3) -> tanh -> Conv1d(H->1,3) stand-in with synthetic weights is used here.
    w1 = 0.1 * jax.random.normal(ks[3], (K, H, W), jnp.float32)
    b1 = 0.1 * jax.random.normal(ks[4], (H, 1), jnp.float32)
    w2 = 0.1 * jax.random.normal(ks[5], (K, 1, H), jnp.float32)
    b2 = 0.1 * jax.random.normal(ks[6], (1, 1), jnp.float32)

    # block_t=128 -> 2 time tiles, exercising the halo / boundary-mask path.
    out = prepost_deepclean(x, input_shift, input_scale, w1, b1, w2, b2,
                            output_scale, output_shift, block_t=128)
    out = jax.block_until_ready(out)

    # reference on the bf16-rounded input (the kernel deliberately streams x in bf16)
    x_q = x.astype(jnp.bfloat16).astype(jnp.float32)
    ref = reference(x_q, input_shift, input_scale, w1, b1, w2, b2,
                    output_scale, output_shift)
    assert out.shape == (B, T)
    err = float(jnp.max(jnp.abs(out - ref)))
    assert jnp.allclose(out, ref, rtol=1e-3, atol=1e-3), err
    print("KERNEL_OK")
</pallas_src>

<mosaic_0001>
module attributes {stable_mosaic.version = 11 : i64} {
  func.func @_prepost_deepclean_kernel(%arg0: i32, %arg1: i32, %arg2: memref<2x8x128xbf16, #tpu.memory_space<vmem>>, %arg3: memref<2x1x8x4xbf16, #tpu.memory_space<vmem>>, %arg4: memref<16x24xf32, #tpu.memory_space<vmem>>, %arg5: memref<16x1xf32, #tpu.memory_space<vmem>>, %arg6: memref<3x16xf32, #tpu.memory_space<vmem>>, %arg7: memref<1xf32, #tpu.memory_space<smem>>, %arg8: memref<2x128xf32, #tpu.memory_space<vmem>>) attributes {dimension_semantics = [#tpu.dimension_semantics<parallel>, #tpu.dimension_semantics<parallel>], iteration_bounds = array<i64: 1, 2>, scalar_prefetch = 0 : i64, scratch_operands = 0 : i64, tpu.core_type = #tpu.core_type<tc>, window_params = [{transform_indices = @transform_0, window_bounds = array<i64: 2, 8, 128>}, {transform_indices = @transform_1, window_bounds = array<i64: 2, 1, 8, 4>}, {pipeline_mode = #tpu.pipeline_mode<synchronous>, transform_indices = @transform_2, window_bounds = array<i64: 16, 24>}, {pipeline_mode = #tpu.pipeline_mode<synchronous>, transform_indices = @transform_3, window_bounds = array<i64: 16, 1>}, {pipeline_mode = #tpu.pipeline_mode<synchronous>, transform_indices = @transform_4, window_bounds = array<i64: 3, 16>}, {transform_indices = @transform_5, window_bounds = array<i64: 1>}, {transform_indices = @transform_6, window_bounds = array<i64: 2, 128>}]} {
    %0 = tpu.iota {dimensions = array<i32: 1>} : vector<1x132xi32>
    %c128_i32 = arith.constant 128 : i32
    %1 = arith.muli %arg1, %c128_i32 : i32
    %2 = vector.broadcast %1 : i32 to vector<1x132xi32>
    %3 = arith.addi %0, %2 : vector<1x132xi32>
    %c1_i32 = arith.constant 1 : i32
    %4 = vector.broadcast %c1_i32 : i32 to vector<1x132xi32>
    %5 = arith.subi %3, %4 : vector<1x132xi32>
    %c0_i32 = arith.constant 0 : i32
    %6 = vector.broadcast %c0_i32 : i32 to vector<1x132xi32>
    %7 = arith.cmpi sge, %5, %6 : vector<1x132xi32>
    %c256_i32 = arith.constant 256 : i32
    %8 = vector.broadcast %c256_i32 : i32 to vector<1x132xi32>
    %9 = arith.cmpi slt, %5, %8 : vector<1x132xi32>
    %10 = arith.andi %7, %9 : vector<1x132xi1>
    %c0 = arith.constant 0 : index
    %c0_0 = arith.constant 0 : index
    %11 = vector.load %arg4[%c0, %c0_0] : memref<16x24xf32, #tpu.memory_space<vmem>>, vector<16x24xf32>
    %c0_1 = arith.constant 0 : index
    %c0_2 = arith.constant 0 : index
    %12 = vector.load %arg5[%c0_1, %c0_2] : memref<16x1xf32, #tpu.memory_space<vmem>>, vector<16x1xf32>
    %c0_3 = arith.constant 0 : index
    %c0_4 = arith.constant 0 : index
    %13 = vector.load %arg6[%c0_3, %c0_4] : memref<3x16xf32, #tpu.memory_space<vmem>>, vector<3x16xf32>
    %c0_5 = arith.constant 0 : index
    %14 = memref.load %arg7[%c0_5] : memref<1xf32, #tpu.memory_space<smem>>
    %c0_6 = arith.constant 0 : index
    %c0_7 = arith.constant 0 : index
    %c0_8 = arith.constant 0 : index
    %c0_9 = arith.constant 0 : index
    %15 = vector.load %arg3[%c0_6, %c0_7, %c0_8, %c0_9] : memref<2x1x8x4xbf16, #tpu.memory_space<vmem>>, vector<1x1x8x2xbf16>
    %16 = vector.shape_cast %15 : vector<1x1x8x2xbf16> to vector<8x2xbf16>
    %c0_10 = arith.constant 0 : index
    %c0_11 = arith.constant 0 : index
    %c0_12 = arith.constant 0 : index
    %c2 = arith.constant 2 : index
    %17 = vector.load %arg3[%c0_10, %c0_11, %c0_12, %c2] : memref<2x1x8x4xbf16, #tpu.memory_space<vmem>>, vector<1x1x8x2xbf16>
    %18 = vector.shape_cast %17 : vector<1x1x8x2xbf16> to vector<8x2xbf16>
    %c0_13 = arith.constant 0 : index
    %c0_14 = arith.constant 0 : index
    %c0_15 = arith.constant 0 : index
    %19 = vector.load %arg2[%c0_13, %c0_14, %c0_15] : memref<2x8x128xbf16, #tpu.memory_space<vmem>>, vector<1x8x128xbf16>
    %20 = vector.shape_cast %19 : vector<1x8x128xbf16> to vector<8x128xbf16>
    %21 = tpu.concatenate %16, %20, %18 in 1 : vector<8x2xbf16>, vector<8x128xbf16>, vector<8x2xbf16> -> vector<8x132xbf16>
    %22 = arith.extf %21 : vector<8x132xbf16> to vector<8x132xf32>
    %23 = vector.extract_strided_slice %22 {offsets = [0, 1], sizes = [8, 131], strides = [1, 1]} : vector<8x132xf32> to vector<8x131xf32>
    %24 = vector.extract_strided_slice %22 {offsets = [0, 0], sizes = [8, 1], strides = [1, 1]} : vector<8x132xf32> to vector<8x1xf32>
    %25 = tpu.concatenate %23, %24 in 1 : vector<8x131xf32>, vector<8x1xf32> -> vector<8x132xf32>
    %26 = vector.extract_strided_slice %22 {offsets = [0, 2], sizes = [8, 130], strides = [1, 1]} : vector<8x132xf32> to vector<8x130xf32>
    %27 = vector.extract_strided_slice %22 {offsets = [0, 0], sizes = [8, 2], strides = [1, 1]} : vector<8x132xf32> to vector<8x2xf32>
    %28 = tpu.concatenate %26, %27 in 1 : vector<8x130xf32>, vector<8x2xf32> -> vector<8x132xf32>
    %29 = tpu.concatenate %22, %25, %28 in 0 : vector<8x132xf32>, vector<8x132xf32>, vector<8x132xf32> -> vector<24x132xf32>
    %cst = arith.constant dense<0.000000e+00> : vector<16x132xf32>
    %30 = tpu.matmul %11, %29, %cst {dimension_numbers = #tpu.dot_dimension_numbers<[1], [0], [0], [1], [0, 0, 1, 1], [], []>} : vector<16x24xf32>, vector<24x132xf32>, vector<16x132xf32> -> vector<16x132xf32>
    %31 = vector.broadcast %12 : vector<16x1xf32> to vector<16x132xf32>
    %32 = arith.addf %30, %31 : vector<16x132xf32>
    %33 = math.tanh %32 : vector<16x132xf32>
    %cst_16 = arith.constant 0.000000e+00 : f32
    %34 = vector.shape_cast %10 : vector<1x132xi1> to vector<1x132xi1>
    %35 = vector.broadcast %34 : vector<1x132xi1> to vector<16x132xi1>
    %36 = vector.broadcast %cst_16 : f32 to vector<16x132xf32>
    %37 = arith.select %35, %33, %36 : vector<16x132xi1>, vector<16x132xf32>
    %cst_17 = arith.constant dense<0.000000e+00> : vector<3x132xf32>
    %38 = tpu.matmul %13, %37, %cst_17 {dimension_numbers = #tpu.dot_dimension_numbers<[1], [0], [0], [1], [0, 0, 1, 1], [], []>} : vector<3x16xf32>, vector<16x132xf32>, vector<3x132xf32> -> vector<3x132xf32>
    %39 = vector.extract_strided_slice %38 {offsets = [0, 0], sizes = [1, 128], strides = [1, 1]} : vector<3x132xf32> to vector<1x128xf32>
    %40 = vector.extract_strided_slice %38 {offsets = [1, 1], sizes = [1, 128], strides = [1, 1]} : vector<3x132xf32> to vector<1x128xf32>
    %41 = arith.addf %39, %40 : vector<1x128xf32>
    %42 = vector.extract_strided_slice %38 {offsets = [2, 2], sizes = [1, 128], strides = [1, 1]} : vector<3x132xf32> to vector<1x128xf32>
    %43 = arith.addf %41, %42 : vector<1x128xf32>
    %c1 = arith.constant 1 : index
    %c0_18 = arith.constant 0 : index
    %c0_19 = arith.constant 0 : index
    %c0_20 = arith.constant 0 : index
    %44 = vector.load %arg3[%c1, %c0_18, %c0_19, %c0_20] : memref<2x1x8x4xbf16, #tpu.memory_space<vmem>>, vector<1x1x8x2xbf16>
    %45 = vector.shape_cast %44 : vector<1x1x8x2xbf16> to vector<8x2xbf16>
    %c1_21 = arith.constant 1 : index
    %c0_22 = arith.constant 0 : index
    %c0_23 = arith.constant 0 : index
    %c2_24 = arith.constant 2 : index
    %46 = vector.load %arg3[%c1_21, %c0_22, %c0_23, %c2_24] : memref<2x1x8x4xbf16, #tpu.memory_space<vmem>>, vector<1x1x8x2xbf16>
    %47 = vector.shape_cast %46 : vector<1x1x8x2xbf16> to vector<8x2xbf16>
    %c1_25 = arith.constant 1 : index
    %c0_26 = arith.constant 0 : index
    %c0_27 = arith.constant 0 : index
    %48 = vector.load %arg2[%c1_25, %c0_26, %c0_27] : memref<2x8x128xbf16, #tpu.memory_space<vmem>>, vector<1x8x128xbf16>
    %49 = vector.shape_cast %48 : vector<1x8x128xbf16> to vector<8x128xbf16>
    %50 = tpu.concatenate %45, %49, %47 in 1 : vector<8x2xbf16>, vector<8x128xbf16>, vector<8x2xbf16> -> vector<8x132xbf16>
    %51 = arith.extf %50 : vector<8x132xbf16> to vector<8x132xf32>
    %52 = vector.extract_strided_slice %51 {offsets = [0, 1], sizes = [8, 131], strides = [1, 1]} : vector<8x132xf32> to vector<8x131xf32>
    %53 = vector.extract_strided_slice %51 {offsets = [0, 0], sizes = [8, 1], strides = [1, 1]} : vector<8x132xf32> to vector<8x1xf32>
    %54 = tpu.concatenate %52, %53 in 1 : vector<8x131xf32>, vector<8x1xf32> -> vector<8x132xf32>
    %55 = vector.extract_strided_slice %51 {offsets = [0, 2], sizes = [8, 130], strides = [1, 1]} : vector<8x132xf32> to vector<8x130xf32>
    %56 = vector.extract_strided_slice %51 {offsets = [0, 0], sizes = [8, 2], strides = [1, 1]} : vector<8x132xf32> to vector<8x2xf32>
    %57 = tpu.concatenate %55, %56 in 1 : vector<8x130xf32>, vector<8x2xf32> -> vector<8x132xf32>
    %58 = tpu.concatenate %51, %54, %57 in 0 : vector<8x132xf32>, vector<8x132xf32>, vector<8x132xf32> -> vector<24x132xf32>
    %cst_28 = arith.constant dense<0.000000e+00> : vector<16x132xf32>
    %59 = tpu.matmul %11, %58, %cst_28 {dimension_numbers = #tpu.dot_dimension_numbers<[1], [0], [0], [1], [0, 0, 1, 1], [], []>} : vector<16x24xf32>, vector<24x132xf32>, vector<16x132xf32> -> vector<16x132xf32>
    %60 = vector.broadcast %12 : vector<16x1xf32> to vector<16x132xf32>
    %61 = arith.addf %59, %60 : vector<16x132xf32>
    %62 = math.tanh %61 : vector<16x132xf32>
    %cst_29 = arith.constant 0.000000e+00 : f32
    %63 = vector.shape_cast %10 : vector<1x132xi1> to vector<1x132xi1>
    %64 = vector.broadcast %63 : vector<1x132xi1> to vector<16x132xi1>
    %65 = vector.broadcast %cst_29 : f32 to vector<16x132xf32>
    %66 = arith.select %64, %62, %65 : vector<16x132xi1>, vector<16x132xf32>
    %cst_30 = arith.constant dense<0.000000e+00> : vector<3x132xf32>
    %67 = tpu.matmul %13, %66, %cst_30 {dimension_numbers = #tpu.dot_dimension_numbers<[1], [0], [0], [1], [0, 0, 1, 1], [], []>} : vector<3x16xf32>, vector<16x132xf32>, vector<3x132xf32> -> vector<3x132xf32>
    %68 = vector.extract_strided_slice %67 {offsets = [0, 0], sizes = [1, 128], strides = [1, 1]} : vector<3x132xf32> to vector<1x128xf32>
    %69 = vector.extract_strided_slice %67 {offsets = [1, 1], sizes = [1, 128], strides = [1, 1]} : vector<3x132xf32> to vector<1x128xf32>
    %70 = arith.addf %68, %69 : vector<1x128xf32>
    %71 = vector.extract_strided_slice %67 {offsets = [2, 2], sizes = [1, 128], strides = [1, 1]} : vector<3x132xf32> to vector<1x128xf32>
    %72 = arith.addf %70, %71 : vector<1x128xf32>
    %73 = tpu.concatenate %43, %72 in 0 : vector<1x128xf32>, vector<1x128xf32> -> vector<2x128xf32>
    %74 = vector.broadcast %14 : f32 to vector<2x128xf32>
    %75 = arith.addf %73, %74 : vector<2x128xf32>
    %c0_31 = arith.constant 0 : index
    %c0_32 = arith.constant 0 : index
    %76 = vector.load %arg8[%c0_31, %c0_32] : memref<2x128xf32, #tpu.memory_space<vmem>>, vector<2x128xf32>
    tpu.vector_store %arg8[%c0_31, %c0_32], %75 {strides = array<i32>} : memref<2x128xf32, #tpu.memory_space<vmem>>, vector<2x128xf32>,
    return
  }
  func.func @transform_0(%arg0: i32, %arg1: i32) -> (i32, i32, i32) {
    %c0_i32 = arith.constant 0 : i32
    %c0_i32_0 = arith.constant 0 : i32
    return %arg0, %c0_i32, %arg1 : i32, i32, i32
  }
  func.func @transform_1(%arg0: i32, %arg1: i32) -> (i32, i32, i32, i32) {
    %c0_i32 = arith.constant 0 : i32
    %c0_i32_0 = arith.constant 0 : i32
    %c0_i32_1 = arith.constant 0 : i32
    return %arg0, %arg1, %c0_i32, %c0_i32_0 : i32, i32, i32, i32
  }
  func.func @transform_2(%arg0: i32, %arg1: i32) -> (i32, i32) {
    %c0_i32 = arith.constant 0 : i32
    %c0_i32_0 = arith.constant 0 : i32
    %c0_i32_1 = arith.constant 0 : i32
    return %c0_i32, %c0_i32_0 : i32, i32
  }
  func.func @transform_3(%arg0: i32, %arg1: i32) -> (i32, i32) {
    %c0_i32 = arith.constant 0 : i32
    %c0_i32_0 = arith.constant 0 : i32
    %c0_i32_1 = arith.constant 0 : i32
    return %c0_i32, %c0_i32_0 : i32, i32
  }
  func.func @transform_4(%arg0: i32, %arg1: i32) -> (i32, i32) {
    %c0_i32 = arith.constant 0 : i32
    %c0_i32_0 = arith.constant 0 : i32
    %c0_i32_1 = arith.constant 0 : i32
    return %c0_i32, %c0_i32_0 : i32, i32
  }
  func.func @transform_5(%arg0: i32, %arg1: i32) -> i32 {
    %c0_i32 = arith.constant 0 : i32
    %c0_i32_0 = arith.constant 0 : i32
    return %c0_i32 : i32
  }
  func.func @transform_6(%arg0: i32, %arg1: i32) -> (i32, i32) {
    %c0_i32 = arith.constant 0 : i32
    return %arg0, %arg1 : i32, i32
  }
}

</mosaic_0001>

<llo_original>
// kernel: tpu_custom_call.1
$region0: #{tpu_custom_call.1}
  #allocation0 [shape = 'u32[]', space=smem, size = 0x4, offset = 0x4, fixed_abs, tag = 'smem constant byte address 0x4 - core index']
  #allocation1 [shape = 'u32[144,128]{1,0:T(1,128)}', space=vmem, size = 0x12000, scoped, tag = 'internal scratch']
  #allocation2 [shape = 'f32[1]{0:T(128)S(6)}', space=smem, size = 0x200, scoped, tag = 'scoped memory for tpu_custom_call.1']
  %s0 = inlined_call_operand.vmem [shape: bf16[2,8,256], index: 0, kind: input, shape index: {}]
  %s1 = inlined_call_operand.vmem [shape: bf16[2,2,8,4], index: 1, kind: input, shape index: {}]
  %s2 = inlined_call_operand.vmem [shape: f32[16,24], index: 2, kind: input, shape index: {}]
  %s3 = inlined_call_operand.vmem [shape: f32[16,1], index: 3, kind: input, shape index: {}]
  %s4 = inlined_call_operand.vmem [shape: f32[3,16], index: 4, kind: input, shape index: {}]
  %s5 = inlined_call_operand.<no memory space> [shape: f32[1], index: 5, kind: input, shape index: {}]
  %s6 = inlined_call_operand.hbm [shape: f32[2,256], index: 6, kind: output, shape index: {}]
  %s7 = sld [smem:[#allocation0]]
  $region139: #{tpu_custom_call.1} parent=0
    _
  %s9 = ssub.s32 1, %s7
  %s10 = scalar_select 0, %s9, %s7
  %11 = sst [smem:[#allocation2]] %s5
  $region1: #{tpu_custom_call.1} parent=0
    #allocation3 [shape = 'u8[8192]{0}', space=vmem, size = 0x2000, scoped, tag = 'input window, operand 0']
    #allocation4 [shape = 'u8[8192]{0}', space=vmem, size = 0x2000, scoped, tag = 'input window, operand 1']
    #allocation5 [shape = 'u8[2048]{0}', space=vmem, size = 0x800, scoped, tag = 'output window, operand 0']
    #allocation6 [shape = 's32[2]{0}', space=sflag, size = 0x8, scoped, tag = 'scoped memory for tpu_custom_call.1']
    %12 = vsyncpa [#allocation6], 0
    %s13 = scalar_lea.sflag [#allocation6], 1
    %14 = vsyncpa %s13, 0
    loop: start=0, step=1, limit=4
    $region2: #{tpu_custom_call.1} parent=1 // loop_pre_header
      _
    $region3: #{tpu_custom_call.1} parent=1 // loop_header
      %s16 = sphi 0, %s20
      %p17 = scmp.ge.s32.totalorder %s16, 4
      %s23 = sphi 0, %s35
      %s24 = sphi 0, %s31
      %s25 = sphi 0, %s23
      %s26 = sphi 0, %s24
      %s27 = sphi 0, %s25
      %s28 = sphi 0, %s26
      %s40 = sphi 0, %s42
      %s43 = sphi 0, %s40
      %s44 = sphi 0, %s43
      %s60 = sphi 0, %s44
      %s68 = sphi 0, %s70
      %s71 = sphi 0, %s68
      %s72 = sphi 0, %s71
      %s88 = sphi 0, %s72
      %s92 = sphi 0, %s92
      %s94 = sphi 0, %s92
      %s95 = sphi 0, %s94
      %s109 = sphi 0, %s95
      %s113 = sphi 0, %s113
      %s115 = sphi 0, %s113
      %s116 = sphi 0, %s115
      %s130 = sphi 0, %s116
      %s134 = sphi 0, %s134
      %s136 = sphi 0, %s134
      %s137 = sphi 0, %s136
      %s151 = sphi 0, %s137
      %s155 = sphi 0, %s155
      %s157 = sphi 0, %s155
      %s158 = sphi 0, %s157
      %s172 = sphi 0, %s158
      %s180 = sphi 0, %s182
      %s183 = sphi 0, %s180
      %s184 = sphi 0, %s183
      %s200 = sphi 0, %s184
    $region4: #{tpu_custom_call.1} parent=1 // loop_header_branch
      %19 = sbr.rel (%p17) target = $region8
    $region5: #{tpu_custom_call.1} parent=1 // loop_body
      %s21 = ssub.s32 %s16, 1
      %s22 = ssub.s32 %s16, 2
      %s29 = sadd.s32 1, %s24
      %p30 = scmp.ge.s32.totalorder %s29, 2
      %s31 = scalar_select %p30, 0, %s29
      %s32 = sadd.s32 1, %s23
      %s33 = scalar_select %p30, %s32, %s23
      %p34 = scmp.ge.s32.totalorder %s33, 1
      %s35 = scalar_select %p34, 0, %s33
      %s36 = ssub.s32 %s23, %s35
      %s37 = ssub.s32 %s24, %s31
      %s38 = sor.u32 %s36, %s37
      %p39 = scmp.eq.s32.totalorder %s38, 0
      %s41 = sadd.s32 %s40, 1
      %s42 = scalar_select %p39, %s40, %s41
      %p45 = pneg %p39
      %p46 = scmp.eq.s32.totalorder %s16, 1
      %p47 = por %p45, %p46
      %p48 = scmp.ne.s32.totalorder %s40, %s43
      %p49 = scmp.eq.s32.totalorder %s16, 0
      %p50 = por %p48, %p49
      %p51 = scmp.ne.s32.totalorder %s40, %s43
      %p52 = scmp.eq.s32.totalorder %s21, 1
      %p53 = por %p51, %p52
      %p54 = scmp.ne.s32.totalorder %s43, %s44
      %p55 = scmp.eq.s32.totalorder %s21, 0
      %p56 = por %p54, %p55
      %p57 = scmp.ne.s32.totalorder %s43, %s44
      %p58 = scmp.eq.s32.totalorder %s22, 1
      %p59 = por %p57, %p58
      %p61 = scmp.ne.s32.totalorder %s44, %s60
      %p62 = scmp.eq.s32.totalorder %s22, 0
      %p63 = por %p61, %p62
      %s64 = ssub.s32 %s23, %s35
      %s65 = ssub.s32 %s24, %s31
      %s66 = sor.u32 %s64, %s65
      %p67 = scmp.eq.s32.totalorder %s66, 0
      %s69 = sadd.s32 %s68, 1
      %s70 = scalar_select %p67, %s68, %s69
      %p73 = pneg %p67
      %p74 = scmp.eq.s32.totalorder %s16, 1
      %p75 = por %p73, %p74
      %p76 = scmp.ne.s32.totalorder %s68, %s71
      %p77 = scmp.eq.s32.totalorder %s16, 0
      %p78 = por %p76, %p77
      %p79 = scmp.ne.s32.totalorder %s68, %s71
      %p80 = scmp.eq.s32.totalorder %s21, 1
      %p81 = por %p79, %p80
      %p82 = scmp.ne.s32.totalorder %s71, %s72
      %p83 = scmp.eq.s32.totalorder %s21, 0
      %p84 = por %p82, %p83
      %p85 = scmp.ne.s32.totalorder %s71, %s72
      %p86 = scmp.eq.s32.totalorder %s22, 1
      %p87 = por %p85, %p86
      %p89 = scmp.ne.s32.totalorder %s72, %s88
      %p90 = scmp.eq.s32.totalorder %s22, 0
      %p91 = por %p89, %p90
      %s93 = sadd.s32 %s92, 1
      %p96 = scmp.eq.s32.totalorder %s16, 1
      %p97 = scmp.ne.s32.totalorder %s92, %s94
      %p98 = scmp.eq.s32.totalorder %s16, 0
      %p99 = por %p97, %p98
      %p100 = scmp.ne.s32.totalorder %s92, %s94
      %p101 = scmp.eq.s32.totalorder %s21, 1
      %p102 = por %p100, %p101
      %p103 = scmp.ne.s32.totalorder %s94, %s95
      %p104 = scmp.eq.s32.totalorder %s21, 0
      %p105 = por %p103, %p104
      %p106 = scmp.ne.s32.totalorder %s94, %s95
      %p107 = scmp.eq.s32.totalorder %s22, 1
      %p108 = por %p106, %p107
      %p110 = scmp.ne.s32.totalorder %s95, %s109
      %p111 = scmp.eq.s32.totalorder %s22, 0
      %p112 = por %p110, %p111
      %s114 = sadd.s32 %s113, 1
      %p117 = scmp.eq.s32.totalorder %s16, 1
      %p118 = scmp.ne.s32.totalorder %s113, %s115
      %p119 = scmp.eq.s32.totalorder %s16, 0
      %p120 = por %p118, %p119
      %p121 = scmp.ne.s32.totalorder %s113, %s115
      %p122 = scmp.eq.s32.totalorder %s21, 1
      %p123 = por %p121, %p122
      %p124 = scmp.ne.s32.totalorder %s115, %s116
      %p125 = scmp.eq.s32.totalorder %s21, 0
      %p126 = por %p124, %p125
      %p127 = scmp.ne.s32.totalorder %s115, %s116
      %p128 = scmp.eq.s32.totalorder %s22, 1
      %p129 = por %p127, %p128
      %p131 = scmp.ne.s32.totalorder %s116, %s130
      %p132 = scmp.eq.s32.totalorder %s22, 0
      %p133 = por %p131, %p132
      %s135 = sadd.s32 %s134, 1
      %p138 = scmp.eq.s32.totalorder %s16, 1
      %p139 = scmp.ne.s32.totalorder %s134, %s136
      %p140 = scmp.eq.s32.totalorder %s16, 0
      %p141 = por %p139, %p140
      %p142 = scmp.ne.s32.totalorder %s134, %s136
      %p143 = scmp.eq.s32.totalorder %s21, 1
      %p144 = por %p142, %p143
      %p145 = scmp.ne.s32.totalorder %s136, %s137
      %p146 = scmp.eq.s32.totalorder %s21, 0
      %p147 = por %p145, %p146
      %p148 = scmp.ne.s32.totalorder %s136, %s137
      %p149 = scmp.eq.s32.totalorder %s22, 1
      %p150 = por %p148, %p149
      %p152 = scmp.ne.s32.totalorder %s137, %s151
      %p153 = scmp.eq.s32.totalorder %s22, 0
      %p154 = por %p152, %p153
      %s156 = sadd.s32 %s155, 1
      %p159 = scmp.eq.s32.totalorder %s16, 1
      %p160 = scmp.ne.s32.totalorder %s155, %s157
      %p161 = scmp.eq.s32.totalorder %s16, 0
      %p162 = por %p160, %p161
      %p163 = scmp.ne.s32.totalorder %s155, %s157
      %p164 = scmp.eq.s32.totalorder %s21, 1
      %p165 = por %p163, %p164
      %p166 = scmp.ne.s32.totalorder %s157, %s158
      %p167 = scmp.eq.s32.totalorder %s21, 0
      %p168 = por %p166, %p167
      %p169 = scmp.ne.s32.totalorder %s157, %s158
      %p170 = scmp.eq.s32.totalorder %s22, 1
      %p171 = por %p169, %p170
      %p173 = scmp.ne.s32.totalorder %s158, %s172
      %p174 = scmp.eq.s32.totalorder %s22, 0
      %p175 = por %p173, %p174
      %s176 = ssub.s32 %s23, %s35
      %s177 = ssub.s32 %s24, %s31
      %s178 = sor.u32 %s176, %s177
      %p179 = scmp.eq.s32.totalorder %s178, 0
      %s181 = sadd.s32 %s180, 1
      %s182 = scalar_select %p179, %s180, %s181
      %p185 = pneg %p179
      %p186 = scmp.eq.s32.totalorder %s16, 1
      %p187 = por %p185, %p186
      %p188 = scmp.ne.s32.totalorder %s180, %s183
      %p189 = scmp.eq.s32.totalorder %s16, 0
      %p190 = por %p188, %p189
      %p191 = scmp.ne.s32.totalorder %s180, %s183
      %p192 = scmp.eq.s32.totalorder %s21, 1
      %p193 = por %p191, %p192
      %p194 = scmp.ne.s32.totalorder %s183, %s184
      %p195 = scmp.eq.s32.totalorder %s21, 0
      %p196 = por %p194, %p195
      %p197 = scmp.ne.s32.totalorder %s183, %s184
      %p198 = scmp.eq.s32.totalorder %s22, 1
      %p199 = por %p197, %p198
      %p201 = scmp.ne.s32.totalorder %s184, %s200
      %p202 = scmp.eq.s32.totalorder %s22, 0
      %p203 = por %p201, %p202
      %p204 = scmp.le.s32.totalorder 1, %s16
      %p205 = scmp.lt.s32.totalorder %s16, 3
      %p206 = pnand %p204, %p205
      %p207 = pneg %p206
      // Predicated region
      $region9: #{tpu_custom_call.1} parent=5 // pred_check
        _
      $region10: #{tpu_custom_call.1} parent=5 // pred_check_branch
        %209 = sbr.rel (%p206) target = $region12
      $region11: #{tpu_custom_call.1} parent=5 // pred_region
        %s210 = ssub.s32 %s16, 1
        // Predicated region
        $region13: #{tpu_custom_call.1} parent=11 // pred_check
          %p211 = pneg %p105
        $region14: #{tpu_custom_call.1} parent=11 // pred_check_branch
          %213 = sbr.rel (%p211) target = $region16
        $region15: #{tpu_custom_call.1} parent=11 // pred_region
          _
        $region16: #{tpu_custom_call.1} parent=11 // pred_fallthru
          _
        // Predicated region
        $region17: #{tpu_custom_call.1} parent=11 // pred_check
          %p214 = pneg %p126
        $region18: #{tpu_custom_call.1} parent=11 // pred_check_branch
          %216 = sbr.rel (%p214) target = $region20
        $region19: #{tpu_custom_call.1} parent=11 // pred_region
          _
        $region20: #{tpu_custom_call.1} parent=11 // pred_fallthru
          _
        // Predicated region
        $region21: #{tpu_custom_call.1} parent=11 // pred_check
          %p217 = pneg %p147
        $region22: #{tpu_custom_call.1} parent=11 // pred_check_branch
          %219 = sbr.rel (%p217) target = $region24
        $region23: #{tpu_custom_call.1} parent=11 // pred_region
          _
        $region24: #{tpu_custom_call.1} parent=11 // pred_fallthru
          _
        // Predicated region
        $region25: #{tpu_custom_call.1} parent=11 // pred_check
          %p220 = pneg %p168
        $region26: #{tpu_custom_call.1} parent=11 // pred_check_branch
          %222 = sbr.rel (%p220) target = $region28
        $region27: #{tpu_custom_call.1} parent=11 // pred_region
          _
        $region28: #{tpu_custom_call.1} parent=11 // pred_fallthru
          _
      $region12: #{tpu_custom_call.1} parent=5 // pred_fallthru
        _
      %p223 = scmp.lt.s32.totalorder %s16, 2
      // Predicated region
      $region29: #{tpu_custom_call.1} parent=5 // pred_check
        %p224 = pneg %p223
      $region30: #{tpu_custom_call.1} parent=5 // pred_check_branch
        %226 = sbr.rel (%p224) target = $region32
      $region31: #{tpu_custom_call.1} parent=5 // pred_region
        // Predicated region
        $region33: #{tpu_custom_call.1} parent=31 // pred_check
          %p227 = pneg %p50
        $region34: #{tpu_custom_call.1} parent=31 // pred_check_branch
          %229 = sbr.rel (%p227) target = $region36
        $region35: #{tpu_custom_call.1} parent=31 // pred_region
          %s230 = sand.u32 %s40, 1
          %s231 = sand.u32 %s40, 1
          %s232 = smul.addr %s231, 8
          %s233 = scalar_lea.vmem [#allocation3], %s232
          %s234 = smul.u32 2, %s23
          %s235 = smul.addr %s234, 2
          %s236 = sadd.s32 %s24, %s235
          %s237 = smul.addr %s236, 4
          %s238 = scalar_lea.vmem %s0, %s237
          // Predicated region
          $region37: #{tpu_custom_call.1} parent=35 // pred_check
            _
          $region38: #{tpu_custom_call.1} parent=35 // pred_check_branch
            %240 = sbr.rel (0) target = $region40
          $region39: #{tpu_custom_call.1} parent=35 // pred_region
            // Predicated region
            $region41: #{tpu_custom_call.1} parent=39 // pred_check
              _
            $region42: #{tpu_custom_call.1} parent=39 // pred_check_branch
              %242 = sbr.rel target = $region44
            $region43: #{tpu_custom_call.1} parent=39 // pred_region
              // Predicated region
              $region56: #{tpu_custom_call.1} parent=43 // pred_check
                _
              $region57: #{tpu_custom_call.1} parent=43 // pred_check_branch
                %260 = sbr.rel (0) target = $region59
              $region58: #{tpu_custom_call.1} parent=43 // pred_region
                loop: start=0, step=1, limit=1
                $region60: #{tpu_custom_call.1} parent=58 // loop_pre_header
                  _
                $region61: #{tpu_custom_call.1} parent=58 // loop_header
                  %s262 = sphi 0, %s266
                  %p263 = scmp.ge.s32.totalorder %s262, 1
                  %s267 = sphi %s238, %s238
                  %s268 = sphi %s233, %s233
                $region62: #{tpu_custom_call.1} parent=58 // loop_header_branch
                  %265 = sbr.rel (%p263) target = $region66
                $region63: #{tpu_custom_call.1} parent=58 // loop_body
                  _
                $region64: #{tpu_custom_call.1} parent=58 // loop_footer
                  %s266 = sadd.s32 1, %s262
                $region65: #{tpu_custom_call.1} parent=58 // loop_footer_branch
                  %261 = sbr.rel target = $region61
                $region66: #{tpu_custom_call.1} parent=58 // loop_exit
                  _
                %s270 = ssub.s32 16, 1
                loop: start=0, step=1, limit=1
                $region67: #{tpu_custom_call.1} parent=58 // loop_pre_header
                  _
                $region68: #{tpu_custom_call.1} parent=58 // loop_header
                  %s272 = sphi 0, %s276
                  %p273 = scmp.ge.s32.totalorder %s272, 1
                  %s277 = sphi %s238, %s238
                  %s278 = sphi %s233, %s233
                $region69: #{tpu_custom_call.1} parent=58 // loop_header_branch
                  %275 = sbr.rel (%p273) target = $region73
                $region70: #{tpu_custom_call.1} parent=58 // loop_body
                  %v279 = vld [vmem:[%s277] sm:%s270]
                  %280 = vst [vmem:[%s278] sm:%s270] %v279
                  %v281 = vld [vmem:[%s277 + $0x8] sm:%s270]
                  %282 = vst [vmem:[%s278 + $0x4] sm:%s270] %v281
                $region71: #{tpu_custom_call.1} parent=58 // loop_footer
                  %s276 = sadd.s32 1, %s272
                $region72: #{tpu_custom_call.1} parent=58 // loop_footer_branch
                  %271 = sbr.rel target = $region68
                $region73: #{tpu_custom_call.1} parent=58 // loop_exit
                  _
              $region59: #{tpu_custom_call.1} parent=43 // pred_fallthru
                _
            $region44: #{tpu_custom_call.1} parent=39 // pred_fallthru
              _
            // Predicated region
            $region45: #{tpu_custom_call.1} parent=39 // pred_check
              _
            $region46: #{tpu_custom_call.1} parent=39 // pred_check_branch
              %244 = sbr.rel (0) target = $region48
            $region47: #{tpu_custom_call.1} parent=39 // pred_region
              %s246 = ssub.s32 16, 1
              loop: start=0, step=1, limit=1
              $region49: #{tpu_custom_call.1} parent=47 // loop_pre_header
                _
              $region50: #{tpu_custom_call.1} parent=47 // loop_header
                %s248 = sphi 0, %s252
                %p249 = scmp.ge.s32.totalorder %s248, 1
                %s253 = sphi %s238, %s238
                %s254 = sphi %s233, %s233
              $region51: #{tpu_custom_call.1} parent=47 // loop_header_branch
                %251 = sbr.rel (%p249) target = $region55
              $region52: #{tpu_custom_call.1} parent=47 // loop_body
                %v255 = vld [vmem:[%s253] sm:%s246]
                %256 = vst [vmem:[%s254] sm:%s246] %v255
                %v257 = vld [vmem:[%s253 + $0x8] sm:%s246]
                %258 = vst [vmem:[%s254 + $0x4] sm:%s246] %v257
              $region53: #{tpu_custom_call.1} parent=47 // loop_footer
                %s252 = sadd.s32 1, %s248
              $region54: #{tpu_custom_call.1} parent=47 // loop_footer_branch
                %247 = sbr.rel target = $region50
              $region55: #{tpu_custom_call.1} parent=47 // loop_exit
                _
            $region48: #{tpu_custom_call.1} parent=39 // pred_fallthru
              _
          $region40: #{tpu_custom_call.1} parent=35 // pred_fallthru
            _
          %283 = vnop
        $region36: #{tpu_custom_call.1} parent=31 // pred_fallthru
          _
        // Predicated region
        $region74: #{tpu_custom_call.1} parent=31 // pred_check
          %p284 = pneg %p78
        $region75: #{tpu_custom_call.1} parent=31 // pred_check_branch
          %286 = sbr.rel (%p284) target = $region77
        $region76: #{tpu_custom_call.1} parent=31 // pred_region
          %s287 = sand.u32 %s68, 1
          %s288 = sand.u32 %s68, 1
          %s289 = smul.addr %s288, 8
          %s290 = scalar_lea.vmem [#allocation4], %s289
          %s291 = smul.u32 2, %s23
          %s292 = smul.addr %s291, 2
          %s293 = sadd.s32 %s24, %s292
          %s294 = smul.addr %s293, 4
          %s295 = scalar_lea.vmem %s1, %s294
          // Predicated region
          $region78: #{tpu_custom_call.1} parent=76 // pred_check
            _
          $region79: #{tpu_custom_call.1} parent=76 // pred_check_branch
            %297 = sbr.rel (0) target = $region81
          $region80: #{tpu_custom_call.1} parent=76 // pred_region
            // Predicated region
            $region82: #{tpu_custom_call.1} parent=80 // pred_check
              _
            $region83: #{tpu_custom_call.1} parent=80 // pred_check_branch
              %299 = sbr.rel target = $region85
            $region84: #{tpu_custom_call.1} parent=80 // pred_region
              // Predicated region
              $region97: #{tpu_custom_call.1} parent=84 // pred_check
                _
              $region98: #{tpu_custom_call.1} parent=84 // pred_check_branch
                %317 = sbr.rel (0) target = $region100
              $region99: #{tpu_custom_call.1} parent=84 // pred_region
                loop: start=0, step=1, limit=1
                $region101: #{tpu_custom_call.1} parent=99 // loop_pre_header
                  _
                $region102: #{tpu_custom_call.1} parent=99 // loop_header
                  %s319 = sphi 0, %s323
                  %p320 = scmp.ge.s32.totalorder %s319, 1
                  %s324 = sphi %s295, %s295
                  %s325 = sphi %s290, %s290
                $region103: #{tpu_custom_call.1} parent=99 // loop_header_branch
                  %322 = sbr.rel (%p320) target = $region107
                $region104: #{tpu_custom_call.1} parent=99 // loop_body
                  _
                $region105: #{tpu_custom_call.1} parent=99 // loop_footer
                  %s323 = sadd.s32 1, %s319
                $region106: #{tpu_custom_call.1} parent=99 // loop_footer_branch
                  %318 = sbr.rel target = $region102
                $region107: #{tpu_custom_call.1} parent=99 // loop_exit
                  _
                %s327 = ssub.s32 16, 1
                loop: start=0, step=1, limit=1
                $region108: #{tpu_custom_call.1} parent=99 // loop_pre_header
                  _
                $region109: #{tpu_custom_call.1} parent=99 // loop_header
                  %s329 = sphi 0, %s333
                  %p330 = scmp.ge.s32.totalorder %s329, 1
                  %s334 = sphi %s295, %s295
                  %s335 = sphi %s290, %s290
                $region110: #{tpu_custom_call.1} parent=99 // loop_header_branch
                  %332 = sbr.rel (%p330) target = $region114
                $region111: #{tpu_custom_call.1} parent=99 // loop_body
                  %v336 = vld [vmem:[%s334] sm:%s327]
                  %337 = vst [vmem:[%s335] sm:%s327] %v336
                  %v338 = vld [vmem:[%s334 + $0x8] sm:%s327]
                  %339 = vst [vmem:[%s335 + $0x4] sm:%s327] %v338
                $region112: #{tpu_custom_call.1} parent=99 // loop_footer
                  %s333 = sadd.s32 1, %s329
                $region113: #{tpu_custom_call.1} parent=99 // loop_footer_branch
                  %328 = sbr.rel target = $region109
                $region114: #{tpu_custom_call.1} parent=99 // loop_exit
                  _
              $region100: #{tpu_custom_call.1} parent=84 // pred_fallthru
                _
            $region85: #{tpu_custom_call.1} parent=80 // pred_fallthru
              _
            // Predicated region
            $region86: #{tpu_custom_call.1} parent=80 // pred_check
              _
            $region87: #{tpu_custom_call.1} parent=80 // pred_check_branch
              %301 = sbr.rel (0) target = $region89
            $region88: #{tpu_custom_call.1} parent=80 // pred_region
              %s303 = ssub.s32 16, 1
              loop: start=0, step=1, limit=1
              $region90: #{tpu_custom_call.1} parent=88 // loop_pre_header
                _
              $region91: #{tpu_custom_call.1} parent=88 // loop_header
                %s305 = sphi 0, %s309
                %p306 = scmp.ge.s32.totalorder %s305, 1
                %s310 = sphi %s295, %s295
                %s311 = sphi %s290, %s290
              $region92: #{tpu_custom_call.1} parent=88 // loop_header_branch
                %308 = sbr.rel (%p306) target = $region96
              $region93: #{tpu_custom_call.1} parent=88 // loop_body
                %v312 = vld [vmem:[%s310] sm:%s303]
                %313 = vst [vmem:[%s311] sm:%s303] %v312
                %v314 = vld [vmem:[%s310 + $0x8] sm:%s303]
                %315 = vst [vmem:[%s311 + $0x4] sm:%s303] %v314
              $region94: #{tpu_custom_call.1} parent=88 // loop_footer
                %s309 = sadd.s32 1, %s305
              $region95: #{tpu_custom_call.1} parent=88 // loop_footer_branch
                %304 = sbr.rel target = $region91
              $region96: #{tpu_custom_call.1} parent=88 // loop_exit
                _
            $region89: #{tpu_custom_call.1} parent=80 // pred_fallthru
              _
          $region81: #{tpu_custom_call.1} parent=76 // pred_fallthru
            _
          %340 = vnop
        $region77: #{tpu_custom_call.1} parent=31 // pred_fallthru
          _
      $region32: #{tpu_custom_call.1} parent=5 // pred_fallthru
        _
      %p341 = scmp.le.s32.totalorder 1, %s16
      %p342 = scmp.lt.s32.totalorder %s16, 3
      %p343 = pnand %p341, %p342
      %p344 = pneg %p343
      // Predicated region
      $region115: #{tpu_custom_call.1} parent=5 // pred_check
        _
      $region116: #{tpu_custom_call.1} parent=5 // pred_check_branch
        %346 = sbr.rel (%p343) target = $region118
      $region117: #{tpu_custom_call.1} parent=5 // pred_region
        %s347 = ssub.s32 %s16, 1
        %s348 = sand.u32 %s43, 1
        %s349 = sand.u32 %s43, 1
        %s350 = smul.addr %s349, 8
        %s351 = scalar_lea.vmem [#allocation3], %s350
        // Predicated region
        $region119: #{tpu_custom_call.1} parent=117 // pred_check
          %p352 = pneg %p56
        $region120: #{tpu_custom_call.1} parent=117 // pred_check_branch
          %354 = sbr.rel (%p352) target = $region122
        $region121: #{tpu_custom_call.1} parent=117 // pred_region
          _
        $region122: #{tpu_custom_call.1} parent=117 // pred_fallthru
          _
        %s355 = sand.u32 %s71, 1
        %s356 = sand.u32 %s71, 1
        %s357 = smul.addr %s356, 8
        %s358 = scalar_lea.vmem [#allocation4], %s357
        // Predicated region
        $region123: #{tpu_custom_call.1} parent=117 // pred_check
          %p359 = pneg %p84
        $region124: #{tpu_custom_call.1} parent=117 // pred_check_branch
          %361 = sbr.rel (%p359) target = $region126
        $region125: #{tpu_custom_call.1} parent=117 // pred_region
          _
        $region126: #{tpu_custom_call.1} parent=117 // pred_fallthru
          _
        %s362 = sand.u32 %s43, 1
        %s363 = sand.u32 %s43, 1
        %s364 = smul.addr %s363, 8
        %s365 = scalar_lea.vmem [#allocation3], %s364
        %p366 = pneg %p56
        %p367 = pneg %p53
        %s368 = sand.u32 %s71, 1
        %s369 = sand.u32 %s71, 1
        %s370 = smul.addr %s369, 8
        %s371 = scalar_lea.vmem [#allocation4], %s370
        %p372 = pneg %p84
        %p373 = pneg %p81
        %p374 = pneg %p105
        %p375 = pneg %p102
        %p376 = pneg %p126
        %p377 = pneg %p123
        %p378 = pneg %p147
        %p379 = pneg %p144
        %p380 = pneg %p168
        %p381 = pneg %p165
        %p382 = pneg %p196
        %p383 = pneg %p193
        %s384 = sand.u32 %s183, 1
        %s385 = scalar_lea.sflag [#allocation6], %s384
        %s386 = sand.u32 %s183, 1
        %s387 = smul.addr %s386, 2
        %s388 = scalar_lea.vmem [#allocation5], %s387
        %s389 = smul.u32 2, %s25
        %s390 = smul.u32 2, %s25
        %v391 = vlaneseq
        %v392 = vand.u32 %v391, 127
        %v393 = vadd.s32 %v392, 128
        %s394 = smul.u32 %s26, 128
        %v395 = vstv %s394
        %v396 = vadd.s32 %v392, %v395
        %v397 = vadd.s32 %v393, %v395
        %v398 = vsub.s32 %v396, 1
        %v399 = vsub.s32 %v397, 1
        %vm400 = vcmp.ge.s32.totalorder %v398, 0
        %vm401 = vcmp.ge.s32.totalorder %v399, 0
        %vm402 = vcmp.lt.s32.totalorder %v398, 256
        %vm403 = vcmp.lt.s32.totalorder %v399, 256
        %vm404 = vmand %vm400, %vm402
        %vm405 = vmand %vm401, %vm403
        %v406 = vld [vmem:[%s2] sm:$0xff]
        %v407 = vld [vmem:[%s2 + $0x8] sm:$0xff]
        %v408 = vld [vmem:[%s3] sm:$0xff]
        %v409 = vld [vmem:[%s3 + $0x8] sm:$0xff]
        %v410 = vld [vmem:[%s4] sm:$0x7]
        %s411 = sld [smem:[#allocation2]]
        %v412 = vld [vmem:[%s358] sm:$0xf]
        %v413 = vld [vmem:[%s351] sm:$0xf]
        %v415 = vunpack.c.l.b16 %v413
        %v416 = vpack.c.b16 %v415, %v415
        %417 = vrot.lane.b32.xlu0 %v416, 2
        %v418 = vpop.permute.xlu0 %417
        %vm419 = vcmask 15360
        %v422 = vsel %vm419, %v412, %v418
        %v424 = vsel %vm419, %v418, %v412
        %v426 = vunpack.c.l.bf16 %v422
        %v427 = vunpack.c.l.bf16 %v424
        %430 = vrot.lane.b32.xlu0 %v426, 127
        %v431 = vpop.permute.xlu0 %430
        %432 = vrot.lane.b32.xlu0 %v427, 127
        %v433 = vpop.permute.xlu0 %432
        %vm434 = vcmask 1039360
        %v435 = vsel %vm434, %v431, %v433
        %438 = vrot.lane.b32.xlu0 %v426, 3
        %v439 = vpop.permute.xlu0 %438
        %vm441 = vcmask 23552
        %v442 = vsel %vm441, %v433, %v439
        %443 = vrot.lane.b32.xlu0 %v426, 126
        %v444 = vpop.permute.xlu0 %443
        %445 = vrot.lane.b32.xlu0 %v427, 126
        %v446 = vpop.permute.xlu0 %445
        %vm447 = vcmask 1031168
        %v448 = vsel %vm447, %v444, %v446
        %451 = vrot.lane.b32.xlu0 %v426, 2
        %v452 = vpop.permute.xlu0 %451
        %v454 = vsel %vm419, %v446, %v452
        %456 = vset.pattern.permute.xlu0 0
        %457 = vperm.xlu0 %456, %v408
        %v458 = vpop.permute.xlu0 %457
        %461 = vset.pattern.permute.xlu0 0
        %462 = vperm.xlu0 %461, %v409
        %v463 = vpop.permute.xlu0 %462
        %vm465 = vcmask 195584
        %v467 = vsel %vm465, %v406, 0
        %v470 = vsel %vm465, %v407, 0
        %472 = vmatprep.subr.mxu0 0.0
        %473 = vmatpush1.msra.mxu0 0.0
        %474 = vmatprep.subr.mxu0 0.0
        %475 = vmatpush1.msra.mxu0 0.0
        %476 = vmatprep.subr.mxu0 0.0
        %477 = vmatpush1.msra.mxu0 0.0
        %478 = vmatprep.subr.mxu0 0.0
        %479 = vmatpush1.msra.mxu0 0.0
        %480 = vmatprep.subr.mxu0 0.0
        %481 = vmatpush1.msra.mxu0 0.0
        %482 = vmatprep.subr.mxu0 0.0
        %483 = vmatpush1.msra.mxu0 0.0
        %484 = vmatprep.subr.mxu0 0.0
        %485 = vmatpush1.msra.mxu0 0.0
        %486 = vmatprep.subr.mxu0 0.0
        %487 = vmatpush1.msra.mxu0 0.0
        %488 = vmatprep.subr.mxu0 0.0
        %489 = vmatpush1.msra.mxu0 0.0
        %490 = vmatprep.subr.mxu0 0.0
        %491 = vmatpush1.msra.mxu0 0.0
        %492 = vmatprep.subr.mxu0 0.0
        %493 = vmatpush1.msra.mxu0 0.0
        %494 = vmatprep.subr.mxu0 0.0
        %495 = vmatpush1.msra.mxu0 0.0
        %496 = vmatprep.subr.mxu0 0.0
        %497 = vmatpush1.msra.mxu0 0.0
        %498 = vmatprep.subr.mxu0 %v454
        %499 = vmatpush1.msra.mxu0 %v448
        %500 = vmatprep.subr.mxu0 %v442
        %501 = vmatpush1.msra.mxu0 %v435
        %502 = vmatprep.subr.mxu0 %v427
        %503 = vmatpush1.msra.mxu0 %v426
        %504 = vmatprep.subr.mxu0 0.0
        %505 = vmatpush2.msra.mxu0 0.0
        %506 = vmatprep.subr.mxu0 0.0
        %507 = vmatpush2.msra.mxu0 0.0
        %508 = vmatprep.subr.mxu0 0.0
        %509 = vmatpush2.msra.mxu0 0.0
        %510 = vmatprep.subr.mxu0 0.0
        %511 = vmatpush2.msra.mxu0 0.0
        %512 = vmatprep.subr.mxu0 0.0
        %513 = vmatpush2.msra.mxu0 0.0
        %514 = vmatprep.subr.mxu0 0.0
        %515 = vmatpush2.msra.mxu0 0.0
        %516 = vmatprep.subr.mxu0 0.0
        %517 = vmatpush2.msra.mxu0 0.0
        %518 = vmatprep.subr.mxu0 0.0
        %519 = vmatpush2.msra.mxu0 0.0
        %520 = vmatprep.subr.mxu0 0.0
        %521 = vmatpush2.msra.mxu0 0.0
        %522 = vmatprep.subr.mxu0 0.0
        %523 = vmatpush2.msra.mxu0 0.0
        %524 = vmatprep.subr.mxu0 0.0
        %525 = vmatpush2.msra.mxu0 0.0
        %526 = vmatprep.subr.mxu0 0.0
        %527 = vmatpush2.msra.mxu0 0.0
        %528 = vmatprep.subr.mxu0 0.0
        %529 = vmatpush2.msra.mxu0 0.0
        %530 = vmatprep.subr.mxu0 0.0
        %531 = vmatpush2.msra.mxu0 0.0
        %532 = vmatprep.subr.mxu0 0.0
        %533 = vmatpush2.msra.mxu0 0.0
        %534 = vmatprep.subr.mxu0 0.0
        %535 = vmatpush2.msra.mxu0 0.0
        %536 = vmatprep.mubr.f32.mxu0 0.0
        %537 = vmatmul.mubr.f32.gmra.mxu0 %v467
        %v538 = vpop.f32.mrf.mxu0
        %v539 = vadd.f32 %v458, %v538
        %v540 = vpop.f32.mrf.mxu0
        %v541 = vadd.f32 %v458, %v540
        %542 = vmatprep.mubr.f32.mxu0 0.0
        %543 = vmatmul.mubr.f32.gmra.mxu0 %v470
        %v544 = vpop.f32.mrf.mxu0
        %v545 = vadd.f32 %v463, %v544
        %v546 = vpop.f32.mrf.mxu0
        %v547 = vadd.f32 %v463, %v546
        %548 = vdwg.mxu0
        %v549 = vtanh.pop %v539
        %v550 = vtanh.pop %v541
        %v551 = vtanh.pop %v545
        %v552 = vtanh.pop %v547
        %v553 = vsel %vm404, 1, 0
        %v554 = vsel %vm405, 1, 0
        %vm555 = vcmp.eq.s32.totalorder %v553, 1
        %vm556 = vcmp.eq.s32.totalorder %v554, 1
        %v557 = vsel %vm555, %v549, 0.0
        %v558 = vsel %vm556, %v550, 0.0
        %v559 = vsel %vm555, %v551, 0.0
        %v560 = vsel %vm556, %v552, 0.0
        %vm561 = vcmask 130048
        %v563 = vsel %vm561, %v410, 0
        %565 = vmatprep.subr.mxu0 0.0
        %566 = vmatpush1.msra.mxu0 0.0
        %567 = vmatprep.subr.mxu0 0.0
        %568 = vmatpush1.msra.mxu0 0.0
        %569 = vmatprep.subr.mxu0 0.0
        %570 = vmatpush1.msra.mxu0 0.0
        %571 = vmatprep.subr.mxu0 0.0
        %572 = vmatpush1.msra.mxu0 0.0
        %573 = vmatprep.subr.mxu0 0.0
        %574 = vmatpush1.msra.mxu0 0.0
        %575 = vmatprep.subr.mxu0 0.0
        %576 = vmatpush1.msra.mxu0 0.0
        %577 = vmatprep.subr.mxu0 0.0
        %578 = vmatpush1.msra.mxu0 0.0
        %579 = vmatprep.subr.mxu0 0.0
        %580 = vmatpush1.msra.mxu0 0.0
        %581 = vmatprep.subr.mxu0 0.0
        %582 = vmatpush1.msra.mxu0 0.0
        %583 = vmatprep.subr.mxu0 0.0
        %584 = vmatpush1.msra.mxu0 0.0
        %585 = vmatprep.subr.mxu0 0.0
        %586 = vmatpush1.msra.mxu0 0.0
        %587 = vmatprep.subr.mxu0 0.0
        %588 = vmatpush1.msra.mxu0 0.0
        %589 = vmatprep.subr.mxu0 0.0
        %590 = vmatpush1.msra.mxu0 0.0
        %591 = vmatprep.subr.mxu0 0.0
        %592 = vmatpush1.msra.mxu0 0.0
        %593 = vmatprep.subr.mxu0 %v560
        %594 = vmatpush1.msra.mxu0 %v559
        %595 = vmatprep.subr.mxu0 %v558
        %596 = vmatpush1.msra.mxu0 %v557
        %597 = vmatprep.subr.mxu0 0.0
        %598 = vmatpush2.msra.mxu0 0.0
        %599 = vmatprep.subr.mxu0 0.0
        %600 = vmatpush2.msra.mxu0 0.0
        %601 = vmatprep.subr.mxu0 0.0
        %602 = vmatpush2.msra.mxu0 0.0
        %603 = vmatprep.subr.mxu0 0.0
        %604 = vmatpush2.msra.mxu0 0.0
        %605 = vmatprep.subr.mxu0 0.0
        %606 = vmatpush2.msra.mxu0 0.0
        %607 = vmatprep.subr.mxu0 0.0
        %608 = vmatpush2.msra.mxu0 0.0
        %609 = vmatprep.subr.mxu0 0.0
        %610 = vmatpush2.msra.mxu0 0.0
        %611 = vmatprep.subr.mxu0 0.0
        %612 = vmatpush2.msra.mxu0 0.0
        %613 = vmatprep.subr.mxu0 0.0
        %614 = vmatpush2.msra.mxu0 0.0
        %615 = vmatprep.subr.mxu0 0.0
        %616 = vmatpush2.msra.mxu0 0.0
        %617 = vmatprep.subr.mxu0 0.0
        %618 = vmatpush2.msra.mxu0 0.0
        %619 = vmatprep.subr.mxu0 0.0
        %620 = vmatpush2.msra.mxu0 0.0
        %621 = vmatprep.subr.mxu0 0.0
        %622 = vmatpush2.msra.mxu0 0.0
        %623 = vmatprep.subr.mxu0 0.0
        %624 = vmatpush2.msra.mxu0 0.0
        %625 = vmatprep.subr.mxu0 0.0
        %626 = vmatpush2.msra.mxu0 0.0
        %627 = vmatprep.subr.mxu0 0.0
        %628 = vmatpush2.msra.mxu0 0.0
        %629 = vmatprep.mubr.f32.mxu0 0.0
        %630 = vmatmul.mubr.f32.gmra.mxu0 %v563
        %v631 = vpop.f32.mrf.mxu0
        %v632 = vadd.f32 0.0, %v631
        %v633 = vpop.f32.mrf.mxu0
        %v634 = vadd.f32 0.0, %v633
        %635 = vdwg.mxu0
        %v638 = vrot.slane %v632, 1
        %v639 = vrot.slane %v634, 1
        %640 = vrot.lane.b32.xlu0 %v638, 127
        %v641 = vpop.permute.xlu0 %640
        %642 = vrot.lane.b32.xlu0 %v639, 127
        %v643 = vpop.permute.xlu0 %642
        %v644 = vsel %vm434, %v641, %v643
        %v646 = vadd.f32 %v632, %v644
        %v647 = vrot.slane %v632, 2
        %v648 = vrot.slane %v634, 2
        %649 = vrot.lane.b32.xlu0 %v647, 126
        %v650 = vpop.permute.xlu0 %649
        %651 = vrot.lane.b32.xlu0 %v648, 126
        %v652 = vpop.permute.xlu0 %651
        %v653 = vsel %vm447, %v650, %v652
        %v655 = vadd.f32 %v646, %v653
        %s656 = scalar_lea.vmem %s358, 4 [#allocation4]
        %v657 = vld [vmem:[%s656] sm:$0xf]
        %s658 = scalar_lea.vmem %s351, 4 [#allocation3]
        %v659 = vld [vmem:[%s658] sm:$0xf]
        %v661 = vunpack.c.l.b16 %v659
        %v662 = vpack.c.b16 %v661, %v661
        %663 = vrot.lane.b32.xlu0 %v662, 2
        %v664 = vpop.permute.xlu0 %663
        %v667 = vsel %vm419, %v657, %v664
        %v669 = vsel %vm419, %v664, %v657
        %v671 = vunpack.c.l.bf16 %v667
        %v672 = vunpack.c.l.bf16 %v669
        %675 = vrot.lane.b32.xlu0 %v671, 127
        %v676 = vpop.permute.xlu0 %675
        %677 = vrot.lane.b32.xlu0 %v672, 127
        %v678 = vpop.permute.xlu0 %677
        %v679 = vsel %vm434, %v676, %v678
        %682 = vrot.lane.b32.xlu0 %v671, 3
        %v683 = vpop.permute.xlu0 %682
        %v685 = vsel %vm441, %v678, %v683
        %686 = vrot.lane.b32.xlu0 %v671, 126
        %v687 = vpop.permute.xlu0 %686
        %688 = vrot.lane.b32.xlu0 %v672, 126
        %v689 = vpop.permute.xlu0 %688
        %v690 = vsel %vm447, %v687, %v689
        %693 = vrot.lane.b32.xlu0 %v671, 2
        %v694 = vpop.permute.xlu0 %693
        %v696 = vsel %vm419, %v689, %v694
        %697 = vmatprep.subr.mxu0 0.0
        %698 = vmatpush1.msra.mxu0 0.0
        %699 = vmatprep.subr.mxu0 0.0
        %700 = vmatpush1.msra.mxu0 0.0
        %701 = vmatprep.subr.mxu0 0.0
        %702 = vmatpush1.msra.mxu0 0.0
        %703 = vmatprep.subr.mxu0 0.0
        %704 = vmatpush1.msra.mxu0 0.0
        %705 = vmatprep.subr.mxu0 0.0
        %706 = vmatpush1.msra.mxu0 0.0
        %707 = vmatprep.subr.mxu0 0.0
        %708 = vmatpush1.msra.mxu0 0.0
        %709 = vmatprep.subr.mxu0 0.0
        %710 = vmatpush1.msra.mxu0 0.0
        %711 = vmatprep.subr.mxu0 0.0
        %712 = vmatpush1.msra.mxu0 0.0
        %713 = vmatprep.subr.mxu0 0.0
        %714 = vmatpush1.msra.mxu0 0.0
        %715 = vmatprep.subr.mxu0 0.0
        %716 = vmatpush1.msra.mxu0 0.0
        %717 = vmatprep.subr.mxu0 0.0
        %718 = vmatpush1.msra.mxu0 0.0
        %719 = vmatprep.subr.mxu0 0.0
        %720 = vmatpush1.msra.mxu0 0.0
        %721 = vmatprep.subr.mxu0 0.0
        %722 = vmatpush1.msra.mxu0 0.0
        %723 = vmatprep.subr.mxu0 %v696
        %724 = vmatpush1.msra.mxu0 %v690
        %725 = vmatprep.subr.mxu0 %v685
        %726 = vmatpush1.msra.mxu0 %v679
        %727 = vmatprep.subr.mxu0 %v672
        %728 = vmatpush1.msra.mxu0 %v671
        %729 = vmatprep.subr.mxu0 0.0
        %730 = vmatpush2.msra.mxu0 0.0
        %731 = vmatprep.subr.mxu0 0.0
        %732 = vmatpush2.msra.mxu0 0.0
        %733 = vmatprep.subr.mxu0 0.0
        %734 = vmatpush2.msra.mxu0 0.0
        %735 = vmatprep.subr.mxu0 0.0
        %736 = vmatpush2.msra.mxu0 0.0
        %737 = vmatprep.subr.mxu0 0.0
        %738 = vmatpush2.msra.mxu0 0.0
        %739 = vmatprep.subr.mxu0 0.0
        %740 = vmatpush2.msra.mxu0 0.0
        %741 = vmatprep.subr.mxu0 0.0
        %742 = vmatpush2.msra.mxu0 0.0
        %743 = vmatprep.subr.mxu0 0.0
        %744 = vmatpush2.msra.mxu0 0.0
        %745 = vmatprep.subr.mxu0 0.0
        %746 = vmatpush2.msra.mxu0 0.0
        %747 = vmatprep.subr.mxu0 0.0
        %748 = vmatpush2.msra.mxu0 0.0
        %749 = vmatprep.subr.mxu0 0.0
        %750 = vmatpush2.msra.mxu0 0.0
        %751 = vmatprep.subr.mxu0 0.0
        %752 = vmatpush2.msra.mxu0 0.0
        %753 = vmatprep.subr.mxu0 0.0
        %754 = vmatpush2.msra.mxu0 0.0
        %755 = vmatprep.subr.mxu0 0.0
        %756 = vmatpush2.msra.mxu0 0.0
        %757 = vmatprep.subr.mxu0 0.0
        %758 = vmatpush2.msra.mxu0 0.0
        %759 = vmatprep.subr.mxu0 0.0
        %760 = vmatpush2.msra.mxu0 0.0
        %761 = vmatprep.mubr.f32.mxu0 0.0
        %762 = vmatmul.mubr.f32.gmra.mxu0 %v467
        %v763 = vpop.f32.mrf.mxu0
        %v764 = vadd.f32 %v458, %v763
        %v765 = vpop.f32.mrf.mxu0
        %v766 = vadd.f32 %v458, %v765
        %767 = vmatprep.mubr.f32.mxu0 0.0
        %768 = vmatmul.mubr.f32.gmra.mxu0 %v470
        %v769 = vpop.f32.mrf.mxu0
        %v770 = vadd.f32 %v463, %v769
        %v771 = vpop.f32.mrf.mxu0
        %v772 = vadd.f32 %v463, %v771
        %773 = vdwg.mxu0
        %v774 = vtanh.pop %v764
        %v775 = vtanh.pop %v766
        %v776 = vtanh.pop %v770
        %v777 = vtanh.pop %v772
        %v778 = vsel %vm555, %v774, 0.0
        %v779 = vsel %vm556, %v775, 0.0
        %v780 = vsel %vm555, %v776, 0.0
        %v781 = vsel %vm556, %v777, 0.0
        %782 = vmatprep.subr.mxu0 0.0
        %783 = vmatpush1.msra.mxu0 0.0
        %784 = vmatprep.subr.mxu0 0.0
        %785 = vmatpush1.msra.mxu0 0.0
        %786 = vmatprep.subr.mxu0 0.0
        %787 = vmatpush1.msra.mxu0 0.0
        %788 = vmatprep.subr.mxu0 0.0
        %789 = vmatpush1.msra.mxu0 0.0
        %790 = vmatprep.subr.mxu0 0.0
        %791 = vmatpush1.msra.mxu0 0.0
        %792 = vmatprep.subr.mxu0 0.0
        %793 = vmatpush1.msra.mxu0 0.0
        %794 = vmatprep.subr.mxu0 0.0
        %795 = vmatpush1.msra.mxu0 0.0
        %796 = vmatprep.subr.mxu0 0.0
        %797 = vmatpush1.msra.mxu0 0.0
        %798 = vmatprep.subr.mxu0 0.0
        %799 = vmatpush1.msra.mxu0 0.0
        %800 = vmatprep.subr.mxu0 0.0
        %801 = vmatpush1.msra.mxu0 0.0
        %802 = vmatprep.subr.mxu0 0.0
        %803 = vmatpush1.msra.mxu0 0.0
        %804 = vmatprep.subr.mxu0 0.0
        %805 = vmatpush1.msra.mxu0 0.0
        %806 = vmatprep.subr.mxu0 0.0
        %807 = vmatpush1.msra.mxu0 0.0
        %808 = vmatprep.subr.mxu0 0.0
        %809 = vmatpush1.msra.mxu0 0.0
        %810 = vmatprep.subr.mxu0 %v781
        %811 = vmatpush1.msra.mxu0 %v780
        %812 = vmatprep.subr.mxu0 %v779
        %813 = vmatpush1.msra.mxu0 %v778
        %814 = vmatprep.subr.mxu0 0.0
        %815 = vmatpush2.msra.mxu0 0.0
        %816 = vmatprep.subr.mxu0 0.0
        %817 = vmatpush2.msra.mxu0 0.0
        %818 = vmatprep.subr.mxu0 0.0
        %819 = vmatpush2.msra.mxu0 0.0
        %820 = vmatprep.subr.mxu0 0.0
        %821 = vmatpush2.msra.mxu0 0.0
        %822 = vmatprep.subr.mxu0 0.0
        %823 = vmatpush2.msra.mxu0 0.0
        %824 = vmatprep.subr.mxu0 0.0
        %825 = vmatpush2.msra.mxu0 0.0
        %826 = vmatprep.subr.mxu0 0.0
        %827 = vmatpush2.msra.mxu0 0.0
        %828 = vmatprep.subr.mxu0 0.0
        %829 = vmatpush2.msra.mxu0 0.0
        %830 = vmatprep.subr.mxu0 0.0
        %831 = vmatpush2.msra.mxu0 0.0
        %832 = vmatprep.subr.mxu0 0.0
        %833 = vmatpush2.msra.mxu0 0.0
        %834 = vmatprep.subr.mxu0 0.0
        %835 = vmatpush2.msra.mxu0 0.0
        %836 = vmatprep.subr.mxu0 0.0
        %837 = vmatpush2.msra.mxu0 0.0
        %838 = vmatprep.subr.mxu0 0.0
        %839 = vmatpush2.msra.mxu0 0.0
        %840 = vmatprep.subr.mxu0 0.0
        %841 = vmatpush2.msra.mxu0 0.0
        %842 = vmatprep.subr.mxu0 0.0
        %843 = vmatpush2.msra.mxu0 0.0
        %844 = vmatprep.subr.mxu0 0.0
        %845 = vmatpush2.msra.mxu0 0.0
        %846 = vmatprep.mubr.f32.mxu0 0.0
        %847 = vmatmul.mubr.f32.gmra.mxu0 %v563
        %v848 = vpop.f32.mrf.mxu0
        %v849 = vadd.f32 0.0, %v848
        %v850 = vpop.f32.mrf.mxu0
        %v851 = vadd.f32 0.0, %v850
        %852 = vdwg.mxu0
        %v855 = vrot.slane %v849, 1
        %v856 = vrot.slane %v851, 1
        %857 = vrot.lane.b32.xlu0 %v855, 127
        %v858 = vpop.permute.xlu0 %857
        %859 = vrot.lane.b32.xlu0 %v856, 127
        %v860 = vpop.permute.xlu0 %859
        %v861 = vsel %vm434, %v858, %v860
        %v863 = vadd.f32 %v849, %v861
        %v864 = vrot.slane %v849, 2
        %v865 = vrot.slane %v851, 2
        %866 = vrot.lane.b32.xlu0 %v864, 126
        %v867 = vpop.permute.xlu0 %866
        %868 = vrot.lane.b32.xlu0 %v865, 126
        %v869 = vpop.permute.xlu0 %868
        %v870 = vsel %vm447, %v867, %v869
        %v872 = vadd.f32 %v863, %v870
        %v874 = vrot.slane %v872, 7
        %vm876 = vcmask 1040384
        %v877 = vsel %vm876, %v655, %v874
        %v878 = vstv %s411
        %v879 = vadd.f32 %v877, %v878
        %880 = vst [vmem:[%s388] sm:$0x3] %v879
        %s881 = sand.u32 %s183, 1
        %s882 = scalar_lea.sflag [#allocation6], %s881
        %s883 = sand.u32 %s183, 1
        %s884 = smul.addr %s883, 2
        %s885 = scalar_lea.vmem [#allocation5], %s884
        // Predicated region
        $region127: #{tpu_custom_call.1} parent=117 // pred_check
          %p886 = pneg %p193
        $region128: #{tpu_custom_call.1} parent=117 // pred_check_branch
          %888 = sbr.rel (%p886) target = $region130
        $region129: #{tpu_custom_call.1} parent=117 // pred_region
          %s890 = ssub.s32 32, 32
          %891 = vsyncadd %s882, %s890
          %s892 = smul.addr %s25, 2
          %s893 = sadd.s32 %s26, %s892
          %s894 = smul.addr %s893, 32
          %s895 = scalar_lea.hbm %s6, %s894
          %s897 = sshll.u32 %s885, 4
          %s898 = int_to_ptr.vmem [resolvable:$true] %s897
          %900 = dma.vmem_to_hbm [thread:$0]  %s898, 32, %s895, %s882
        $region130: #{tpu_custom_call.1} parent=117 // pred_fallthru
          _
      $region118: #{tpu_custom_call.1} parent=5 // pred_fallthru
        _
      %p901 = scmp.le.s32.totalorder 2, %s16
      // Predicated region
      $region131: #{tpu_custom_call.1} parent=5 // pred_check
        %p902 = pneg %p901
      $region132: #{tpu_custom_call.1} parent=5 // pred_check_branch
        %904 = sbr.rel (%p902) target = $region134
      $region133: #{tpu_custom_call.1} parent=5 // pred_region
        %s905 = ssub.s32 %s16, 2
        // Predicated region
        $region135: #{tpu_custom_call.1} parent=133 // pred_check
          %p906 = pneg %p199
        $region136: #{tpu_custom_call.1} parent=133 // pred_check_branch
          %908 = sbr.rel (%p906) target = $region138
        $region137: #{tpu_custom_call.1} parent=133 // pred_region
          %s909 = sand.u32 %s184, 1
          %s910 = scalar_lea.sflag [#allocation6], %s909
          %s911 = sand.u32 %s184, 1
          %s912 = smul.addr %s911, 2
          %s913 = scalar_lea.vmem [#allocation5], %s912
          %914 = dma.done %s910, 32
        $region138: #{tpu_custom_call.1} parent=133 // pred_fallthru
          _
      $region134: #{tpu_custom_call.1} parent=5 // pred_fallthru
        _
    $region6: #{tpu_custom_call.1} parent=1 // loop_footer
      %s20 = sadd.s32 1, %s16
    $region7: #{tpu_custom_call.1} parent=1 // loop_footer_branch
      %15 = sbr.rel target = $region3
    $region8: #{tpu_custom_call.1} parent=1 // loop_exit
      _
    %915 = vsyncpa [#allocation6], 1
    %s916 = scalar_lea.sflag [#allocation6], 1
    %917 = vsyncpa %s916, 1

</llo_original>
